<compile_context>
chip_gen: v5e
topology: v5e:2x2
jax: 0.10.0
libtpu: 0.0.40
codegen_flags: <defaults>
</compile_context>

<pallas_src>
import jax
import jax.numpy as jnp
from jax.experimental import pallas as pl
from jax.experimental.pallas import tpu as pltpu


def _round_up(x, m):
    return (x + m - 1) // m * m


def _pick_tile(dim, candidates):
    for c in candidates:
        if dim >= c and dim % c == 0:
            return c
    return dim


def _choose_tiles(M, K, N, x_bytes, w_bytes, out_bytes, budget=10 * 2**20):
    """Largest (tm, tn) whose double-buffered VMEM footprint fits `budget`."""
    sub_align = 16 if (x_bytes == 2 or out_bytes == 2) else 8
    tn_cands = [t for t in (1024, 512, 256, 128) if N % t == 0]
    tm_cands = [t for t in (1024, 512, 256, 128, 64, 32, 16, 8)
                if M % t == 0 and (t % sub_align == 0 or t == M)]
    if not tn_cands:
        tn_cands = [N]            # full dim is always layout-legal
    if not tm_cands:
        tm_cands = [M]
    best = None
    for tn in tn_cands:
        for tm in tm_cands:      # descending: first fit is largest for this tn
            est = 2 * (tm * K * x_bytes + K * tn * w_bytes + tn * 4
                       + tm * tn * out_bytes)
            if est <= budget:
                if best is None or tm * tn > best[0] * best[1]:
                    best = (tm, tn)
                break
    if best is None:
        best = (tm_cands[-1], tn_cands[-1])
    return best


# ---------------------------------------------------------------------------
# Kernel 1: parallel GEMM with bias (bf16 operands, f32 accumulation).
# Used for the hoisted layer-1 input projection and the vocab projection.
# ---------------------------------------------------------------------------
def _matmul_bias_kernel(x_ref, w_ref, b_ref, o_ref):
    acc = jnp.dot(x_ref[...], w_ref[...], preferred_element_type=jnp.float32)
    o_ref[...] = (acc + b_ref[...]).astype(o_ref.dtype)


def matmul_bias(x, w, b, out_dtype=jnp.float32):
    """x: (M, K), w: (K, N) (bf16 recommended), b: (1, N) f32 -> (M, N)."""
    M, K = x.shape
    _, N = w.shape
    xb = jnp.dtype(x.dtype).itemsize
    wb = jnp.dtype(w.dtype).itemsize
    ob = jnp.dtype(out_dtype).itemsize
    tm, tn = _choose_tiles(M, K, N, xb, wb, ob)
    m_tiles, n_tiles = M // tm, N // tn

    # Grid ordering: the operand that would otherwise be re-streamed from HBM
    # the most gets a constant block index across the inner sweep, so Pallas
    # keeps it resident instead of refetching it.
    w_restream = m_tiles * K * N * wb   # cost if N-tiles are the inner axis
    x_restream = n_tiles * M * K * xb   # cost if M-tiles are the inner axis
    if w_restream <= x_restream:
        grid = (m_tiles, n_tiles)       # i outer, j inner: x tile held
        x_map = lambda i, j: (i, 0)
        w_map = lambda i, j: (0, j)
        o_map = lambda i, j: (i, j)
    else:
        grid = (n_tiles, m_tiles)       # j outer, i inner: w tile held
        x_map = lambda j, i: (i, 0)
        w_map = lambda j, i: (0, j)
        o_map = lambda j, i: (i, j)

    return pl.pallas_call(
        _matmul_bias_kernel,
        out_shape=jax.ShapeDtypeStruct((M, N), out_dtype),
        grid=grid,
        in_specs=[
            pl.BlockSpec((tm, K), x_map),
            pl.BlockSpec((K, tn), w_map),
            pl.BlockSpec((1, tn), w_map),   # bias follows the N tiling
        ],
        out_specs=pl.BlockSpec((tm, tn), o_map),
        compiler_params=pltpu.CompilerParams(
            dimension_semantics=("parallel", "parallel")),
    )(x, w, b)


# ---------------------------------------------------------------------------
# Kernel 2: sequential LSTM recurrence (2 layers), chunked over time.
# Only the recurrent matmuls run here; the layer-1 input projection is
# precomputed (xg1, bf16), layer 2 is one fused [h1;h2] @ [W_ih2;W_hh2].
# Gate columns were permuted to [i, f, o, g] at weight-prep time.
# ---------------------------------------------------------------------------
def _lstm_recurrent_kernel(xg1_ref, whh1_ref, w2_ref, b2_ref, h2o_ref,
                           h12, c1, c2):
    Bp = h12.shape[0]
    Hp = h12.shape[1] // 2
    Tc = xg1_ref.shape[0]
    bf = jnp.bfloat16

    # zero-init hidden / cell state at the first time chunk (hidden=None)
    @pl.when(pl.program_id(0) == 0)
    def _():
        h12[...] = jnp.zeros_like(h12)
        c1[...] = jnp.zeros_like(c1)
        c2[...] = jnp.zeros_like(c2)

    whh1 = whh1_ref[...]                                    # (Hp, 4Hp) bf16
    w2 = w2_ref[...]                                        # (2Hp, 4Hp) bf16
    # hoist the bias broadcast out of the time loop (no CSE for broadcasts)
    b2b = jnp.broadcast_to(b2_ref[...], (Bp, 4 * Hp))       # f32

    def gates(pre):
        # gate order [i, f, o, g]: one sigmoid slab + one tanh slab
        sig = jax.nn.sigmoid(pre[:, :3 * Hp])
        g = jnp.tanh(pre[:, 3 * Hp:])
        return sig[:, :Hp], sig[:, Hp:2 * Hp], sig[:, 2 * Hp:3 * Hp], g

    def step(t, carry):
        # ---- layer 1: x @ W_ih1 + b1 precomputed outside (xg1, bf16) -------
        h1 = h12[:, :Hp]
        g1 = xg1_ref[t].astype(jnp.float32) + jnp.dot(
            h1.astype(bf), whh1, preferred_element_type=jnp.float32)
        i1, f1, o1, gg1 = gates(g1)
        c1n = f1 * c1[...] + i1 * gg1
        h1n = o1 * jnp.tanh(c1n)
        c1[...] = c1n
        h12[:, :Hp] = h1n                 # in-place: no per-step concatenate

        # ---- layer 2: fused [h1_t ; h2_{t-1}] @ [W_ih2 ; W_hh2] ------------
        g2 = jnp.dot(h12[...].astype(bf), w2,
                     preferred_element_type=jnp.float32) + b2b
        i2, f2, o2, gg2 = gates(g2)
        c2n = f2 * c2[...] + i2 * gg2
        h2n = o2 * jnp.tanh(c2n)
        c2[...] = c2n
        h12[:, Hp:] = h2n

        h2o_ref[t] = h2n.astype(h2o_ref.dtype)
        return carry

    jax.lax.fori_loop(0, Tc, step, 0, unroll=min(4, Tc))


def _run_recurrence(xg1, whh1_bf, w2_bf, b2_p, Bp, Hp, Tc):
    T = xg1.shape[0]

    # VMEM budget estimate (weights are double-buffered by the pipeline even
    # though their block index is constant).
    weight_bytes = (Hp * 4 * Hp + 2 * Hp * 4 * Hp) * 2 + 4 * Hp * 4
    est = (2 * Tc * Bp * 4 * Hp * 2          # xg1 chunk (bf16), double-buffered
           + 2 * weight_bytes                # weights + bias
           + 2 * Tc * Bp * Hp * 2            # h2 output chunk (bf16)
           + Bp * 4 * Hp * 4)                # f32 scratches (h12, c1, c2)
    vmem_limit = None
    if est > 14 * 2**20:
        # TODO(synk): for Hp >= ~1536 on v7x (64 MiB VMEM) keep w2 in HBM
        # (memory_space=pl.ANY) and stream gate-column tiles per step.
        vmem_limit = min(int(est * 1.5), 110 * 2**20)

    grid_spec = pltpu.PrefetchScalarGridSpec(
        num_scalar_prefetch=0,
        grid=(T // Tc,),
        in_specs=[
            pl.BlockSpec((Tc, Bp, 4 * Hp), lambda i: (i, 0, 0)),   # xg1 chunk
            pl.BlockSpec((Hp, 4 * Hp), lambda i: (0, 0)),          # W_hh1 (bf16)
            pl.BlockSpec((2 * Hp, 4 * Hp), lambda i: (0, 0)),      # [W_ih2;W_hh2]
            pl.BlockSpec((1, 4 * Hp), lambda i: (0, 0)),           # b2 (f32)
        ],
        out_specs=pl.BlockSpec((Tc, Bp, Hp), lambda i: (i, 0, 0)),  # h2 chunk
        scratch_shapes=[
            pltpu.VMEM((Bp, 2 * Hp), jnp.float32),   # [h1 ; h2] persistent
            pltpu.VMEM((Bp, Hp), jnp.float32),       # c1
            pltpu.VMEM((Bp, Hp), jnp.float32),       # c2
        ],
    )
    # TODO(synk): on v7x, split Bp across the two TensorCores (parallel batch
    # grid axis) once Bp >= 16; not worthwhile at Bp == 8.
    return pl.pallas_call(
        _lstm_recurrent_kernel,
        out_shape=jax.ShapeDtypeStruct((T, Bp, Hp), jnp.bfloat16),
        grid_spec=grid_spec,
        compiler_params=pltpu.CompilerParams(
            dimension_semantics=("arbitrary",),      # time recurrence: serial
            vmem_limit_bytes=vmem_limit),
    )(xg1, whh1_bf, w2_bf, b2_p)


# ---------------------------------------------------------------------------
# Forward wrapper
# ---------------------------------------------------------------------------
def lstm_lm_forward(tokens, params):
    """tokens: (B, T) int32. Returns logits (B, T, vocab_size) float32."""
    emb, wih1, whh1, b1, wih2, whh2, b2, wout, bout = params
    B, T = tokens.shape
    V, E = emb.shape
    H = whh1.shape[0]

    Bp = _round_up(B, 8)          # sublane alignment
    Hp = _round_up(H, 128)        # lane alignment of hidden / gate slices
    Vp = _round_up(V, 128)        # lane alignment of logits
    Tc = _pick_tile(T, (32, 16, 8, 4, 2, 1))   # timesteps per grid step

    bf = jnp.bfloat16
    gate_perm = jnp.array([0, 1, 3, 2])   # PyTorch [i,f,g,o] -> kernel [i,f,o,g]

    def prep_gate_cols(w):
        io = w.shape[0]
        wg = w.reshape(io, 4, H)[:, gate_perm, :]
        return jnp.pad(wg, ((0, 0), (0, 0), (0, Hp - H))).reshape(io, 4 * Hp)

    # bf16 weights for every MXU operand; biases stay f32 (added post-matmul)
    wih1_p = prep_gate_cols(wih1).astype(bf)                          # (E, 4Hp)
    b1_p = prep_gate_cols(b1)                                         # (1, 4Hp)
    whh1_p = jnp.pad(prep_gate_cols(whh1), ((0, Hp - H), (0, 0))).astype(bf)
    wih2_p = jnp.pad(prep_gate_cols(wih2), ((0, Hp - H), (0, 0)))
    whh2_p = jnp.pad(prep_gate_cols(whh2), ((0, Hp - H), (0, 0)))
    b2_p = prep_gate_cols(b2)                                         # (1, 4Hp)
    w2_p = jnp.concatenate([wih2_p, whh2_p], axis=0).astype(bf)       # (2Hp,4Hp)
    wout_p = jnp.pad(wout, ((0, Hp - H), (0, Vp - V))).astype(bf)     # (Hp, Vp)
    bout_p = jnp.pad(bout, ((0, 0), (0, Vp - V)))                     # (1, Vp)

    # ---- embedding lookup (XLA gather) + hoisted layer-1 input projection --
    x = emb[tokens.T].astype(bf)                          # (T, B, E) bf16
    x = jnp.pad(x, ((0, 0), (0, Bp - B), (0, 0)))         # (T, Bp, E)
    xg1 = matmul_bias(x.reshape(T * Bp, E), wih1_p, b1_p, out_dtype=bf)
    xg1 = xg1.reshape(T, Bp, 4 * Hp)

    # ---- sequential recurrence (only the truly recurrent matmuls) ----------
    h2_all = _run_recurrence(xg1, whh1_p, w2_p, b2_p, Bp, Hp, Tc)  # (T,Bp,Hp) bf16

    # ---- hoisted vocab projection: one big parallel GEMM, batch-first ------
    # only the small bf16 (T, Bp, Hp) tensor is transposed; logits come out
    # (B, T, V) directly from the GEMM.
    h2_bt = jnp.transpose(h2_all, (1, 0, 2)).reshape(Bp * T, Hp)
    logits = matmul_bias(h2_bt, wout_p, bout_p, out_dtype=jnp.float32)
    logits = logits.reshape(Bp, T, Vp)
    return logits[:B, :, :V]


# ---------------------------------------------------------------------------
# Parameter construction (weights stored as (in_features, out_features),
# i.e. pre-transposed relative to PyTorch; b_ih + b_hh folded into one bias)
# ---------------------------------------------------------------------------
def init_params(key, vocab_size, embedding_dim, hidden_dim):
    V, E, H = vocab_size, embedding_dim, hidden_dim
    ks = jax.random.split(key, 9)
    s = 0.1
    emb = jax.random.normal(ks[0], (V, E), jnp.float32) * s
    wih1 = jax.random.normal(ks[1], (E, 4 * H), jnp.float32) * s
    whh1 = jax.random.normal(ks[2], (H, 4 * H), jnp.float32) * s
    b1 = jax.random.normal(ks[3], (1, 4 * H), jnp.float32) * s
    wih2 = jax.random.normal(ks[4], (H, 4 * H), jnp.float32) * s
    whh2 = jax.random.normal(ks[5], (H, 4 * H), jnp.float32) * s
    b2 = jax.random.normal(ks[6], (1, 4 * H), jnp.float32) * s
    wout = jax.random.normal(ks[7], (H, V), jnp.float32) * s
    bout = jax.random.normal(ks[8], (1, V), jnp.float32) * s
    return (emb, wih1, whh1, b1, wih2, whh2, b2, wout, bout)


def reference_forward(tokens, params):
    """Pure-JAX reference mirroring the kernel's bf16 matmul-operand casts."""
    emb, wih1, whh1, b1, wih2, whh2, b2, wout, bout = params
    B, T = tokens.shape
    H = whh1.shape[0]
    bf = jnp.bfloat16

    def bdot(a, w):
        return jnp.dot(a.astype(bf), w.astype(bf),
                       preferred_element_type=jnp.float32)

    x = emb[tokens]                                       # (B, T, E)
    xg1 = (bdot(x.reshape(B * T, -1), wih1) + b1).astype(bf).astype(jnp.float32)
    xg1 = xg1.reshape(B, T, 4 * H)

    def gates(g):
        i = jax.nn.sigmoid(g[:, 0:H]); f = jax.nn.sigmoid(g[:, H:2 * H])
        gg = jnp.tanh(g[:, 2 * H:3 * H]); o = jax.nn.sigmoid(g[:, 3 * H:4 * H])
        return i, f, gg, o

    h1 = jnp.zeros((B, H), jnp.float32); c1 = jnp.zeros((B, H), jnp.float32)
    h2 = jnp.zeros((B, H), jnp.float32); c2 = jnp.zeros((B, H), jnp.float32)
    outs = []
    for t in range(T):
        g1 = xg1[:, t] + bdot(h1, whh1)
        i1, f1, gg1, o1 = gates(g1)
        c1 = f1 * c1 + i1 * gg1
        h1 = o1 * jnp.tanh(c1)
        g2 = bdot(h1, wih2) + bdot(h2, whh2) + b2
        i2, f2, gg2, o2 = gates(g2)
        c2 = f2 * c2 + i2 * gg2
        h2 = o2 * jnp.tanh(c2)
        outs.append(bdot(h2, wout) + bout)
    return jnp.stack(outs, axis=1)                        # (B, T, V)


if __name__ == "__main__":
    vocab_size, embedding_dim, hidden_dim = 32, 16, 32
    batch, seq_len = 2, 8

    key = jax.random.PRNGKey(0)
    pkey, tkey = jax.random.split(key)
    params = init_params(pkey, vocab_size, embedding_dim, hidden_dim)
    tokens = jax.random.randint(tkey, (batch, seq_len), 0, vocab_size, jnp.int32)

    logits = lstm_lm_forward(tokens, params)
    jax.block_until_ready(logits)

    assert logits.shape == (batch, seq_len, vocab_size)
    assert logits.dtype == jnp.float32

    ref = reference_forward(tokens, params)
    max_err = float(jnp.max(jnp.abs(logits - ref)))
    assert max_err < 1e-3, f"mismatch vs reference: {max_err}"

    print("KERNEL_OK")
</pallas_src>

<mosaic_0001>
module attributes {stable_mosaic.version = 11 : i64} {
  func.func @_matmul_bias_kernel(%arg0: i32, %arg1: i32, %arg2: memref<64x16xbf16, #tpu.memory_space<vmem>>, %arg3: memref<16x512xbf16, #tpu.memory_space<vmem>>, %arg4: memref<1x512xf32, #tpu.memory_space<vmem>>, %arg5: memref<64x512xbf16, #tpu.memory_space<vmem>>) attributes {dimension_semantics = [#tpu.dimension_semantics<parallel>, #tpu.dimension_semantics<parallel>], iteration_bounds = array<i64: 1, 1>, scalar_prefetch = 0 : i64, scratch_operands = 0 : i64, tpu.core_type = #tpu.core_type<tc>, window_params = [{transform_indices = @transform_0, window_bounds = array<i64: 64, 16>}, {transform_indices = @transform_1, window_bounds = array<i64: 16, 512>}, {transform_indices = @transform_2, window_bounds = array<i64: 1, 512>}, {transform_indices = @transform_3, window_bounds = array<i64: 64, 512>}]} {
    %c0 = arith.constant 0 : index
    %c0_0 = arith.constant 0 : index
    %0 = vector.load %arg2[%c0, %c0_0] : memref<64x16xbf16, #tpu.memory_space<vmem>>, vector<64x16xbf16>
    %c0_1 = arith.constant 0 : index
    %c0_2 = arith.constant 0 : index
    %1 = vector.load %arg3[%c0_1, %c0_2] : memref<16x512xbf16, #tpu.memory_space<vmem>>, vector<16x512xbf16>
    %cst = arith.constant dense<0.000000e+00> : vector<64x512xf32>
    %2 = tpu.matmul %0, %1, %cst {dimension_numbers = #tpu.dot_dimension_numbers<[1], [0], [0], [1], [0, 0, 1, 1], [], []>} : vector<64x16xbf16>, vector<16x512xbf16>, vector<64x512xf32> -> vector<64x512xf32>
    %c0_3 = arith.constant 0 : index
    %c0_4 = arith.constant 0 : index
    %3 = vector.load %arg4[%c0_3, %c0_4] : memref<1x512xf32, #tpu.memory_space<vmem>>, vector<1x512xf32>
    %4 = vector.broadcast %3 : vector<1x512xf32> to vector<64x512xf32>
    %5 = arith.addf %2, %4 : vector<64x512xf32>
    %6 = arith.truncf %5 : vector<64x512xf32> to vector<64x512xbf16>
    %c0_5 = arith.constant 0 : index
    %c0_6 = arith.constant 0 : index
    %7 = vector.load %arg5[%c0_5, %c0_6] : memref<64x512xbf16, #tpu.memory_space<vmem>>, vector<64x512xbf16>
    tpu.vector_store %arg5[%c0_5, %c0_6], %6 {strides = array<i32>} : memref<64x512xbf16, #tpu.memory_space<vmem>>, vector<64x512xbf16>,
    return
  }
  func.func @transform_0(%arg0: i32, %arg1: i32) -> (i32, i32) {
    %c0_i32 = arith.constant 0 : i32
    %c0_i32_0 = arith.constant 0 : i32
    return %arg1, %c0_i32 : i32, i32
  }
  func.func @transform_1(%arg0: i32, %arg1: i32) -> (i32, i32) {
    %c0_i32 = arith.constant 0 : i32
    %c0_i32_0 = arith.constant 0 : i32
    return %c0_i32, %arg0 : i32, i32
  }
  func.func @transform_2(%arg0: i32, %arg1: i32) -> (i32, i32) {
    %c0_i32 = arith.constant 0 : i32
    %c0_i32_0 = arith.constant 0 : i32
    return %c0_i32, %arg0 : i32, i32
  }
  func.func @transform_3(%arg0: i32, %arg1: i32) -> (i32, i32) {
    %c0_i32 = arith.constant 0 : i32
    return %arg1, %arg0 : i32, i32
  }
}

</mosaic_0001>

<llo_original>
// kernel: tpu_custom_call.1
$region0: #{tpu_custom_call.1}
  #allocation0 [shape = 'u32[]', space=smem, size = 0x4, offset = 0x4, fixed_abs, tag = 'smem constant byte address 0x4 - core index']
  #allocation1 [shape = 'u32[72,128]{1,0:T(1,128)}', space=vmem, size = 0x9000, scoped, tag = 'internal scratch']
  %s0 = inlined_call_operand.vmem [shape: bf16[64,16], index: 0, kind: input, shape index: {}]
  %s1 = inlined_call_operand.vmem [shape: bf16[16,512], index: 1, kind: input, shape index: {}]
  %s2 = inlined_call_operand.vmem [shape: f32[1,512], index: 2, kind: input, shape index: {}]
  %s3 = inlined_call_operand.hbm [shape: bf16[64,512], index: 3, kind: output, shape index: {}]
  %s4 = sld [smem:[#allocation0]]
  $region22: #{tpu_custom_call.1} parent=0
    _
  %s6 = ssub.s32 1, %s4
  %s7 = scalar_select 0, %s6, %s4
  $region1: #{tpu_custom_call.1} parent=0
    #allocation2 [shape = 'u8[65536]{0}', space=vmem, size = 0x10000, scoped, tag = 'output window, operand 0, single buffered']
    #allocation3 [shape = 's32[1]{0}', space=sflag, size = 0x4, scoped, tag = 'scoped memory for tpu_custom_call.1']
    %8 = vsyncpa [#allocation3], 0
    // Predicated region
    $region2: #{tpu_custom_call.1} parent=1 // pred_check
      _
    $region3: #{tpu_custom_call.1} parent=1 // pred_check_branch
      %10 = sbr.rel (0) target = $region5
    $region4: #{tpu_custom_call.1} parent=1 // pred_region
      _
    $region5: #{tpu_custom_call.1} parent=1 // pred_fallthru
      _
    // Predicated region
    $region6: #{tpu_custom_call.1} parent=1 // pred_check
      _
    $region7: #{tpu_custom_call.1} parent=1 // pred_check_branch
      %12 = sbr.rel (0) target = $region9
    $region8: #{tpu_custom_call.1} parent=1 // pred_region
      _
    $region9: #{tpu_custom_call.1} parent=1 // pred_fallthru
      _
    // Predicated region
    $region10: #{tpu_custom_call.1} parent=1 // pred_check
      _
    $region11: #{tpu_custom_call.1} parent=1 // pred_check_branch
      %14 = sbr.rel (0) target = $region13
    $region12: #{tpu_custom_call.1} parent=1 // pred_region
      _
    $region13: #{tpu_custom_call.1} parent=1 // pred_fallthru
      _
    %v16 = vld [vmem:[%s0] sm:$0xf]
    %v17 = vld [vmem:[%s0 + $0x4] sm:$0xf]
    %v18 = vld [vmem:[%s0 + $0x8] sm:$0xf]
    %v19 = vld [vmem:[%s0 + $0xc] sm:$0xf]
    %v20 = vld [vmem:[%s0 + $0x10] sm:$0xf]
    %v21 = vld [vmem:[%s0 + $0x14] sm:$0xf]
    %v22 = vld [vmem:[%s0 + $0x18] sm:$0xf]
    %v23 = vld [vmem:[%s0 + $0x1c] sm:$0xf]
    %v24 = vld [vmem:[%s1] sm:$0xff]
    %v25 = vld [vmem:[%s1 + $0x8] sm:$0xff]
    %v26 = vld [vmem:[%s1 + $0x10] sm:$0xff]
    %v27 = vld [vmem:[%s1 + $0x18] sm:$0xff]
    %v28 = vld [vmem:[%s2] sm:$0xf]
    %v30 = vperm.slane %v28, 0
    %v31 = vperm.slane %v28, 1
    %v32 = vperm.slane %v28, 2
    %v33 = vperm.slane %v28, 3
    %v46 = vunpack.c.l.b16 %v16
    %v47 = vunpack.c.l.b16 %v17
    %v48 = vunpack.c.l.b16 %v18
    %v49 = vunpack.c.l.b16 %v19
    %v50 = vunpack.c.l.b16 %v20
    %v51 = vunpack.c.l.b16 %v21
    %v52 = vunpack.c.l.b16 %v22
    %v53 = vunpack.c.l.b16 %v23
    %v54 = vpack.c.b16 %v47, %v46
    %v55 = vpack.c.b16 %v49, %v48
    %v56 = vpack.c.b16 %v51, %v50
    %v57 = vpack.c.b16 %v53, %v52
    %v62 = vunpack.c.l.b16 %v24
    %v63 = vunpack.c.h.b16 %v24
    %v64 = vunpack.c.l.b16 %v25
    %v65 = vunpack.c.h.b16 %v25
    %v66 = vunpack.c.l.b16 %v26
    %v67 = vunpack.c.h.b16 %v26
    %v68 = vunpack.c.l.b16 %v27
    %v69 = vunpack.c.h.b16 %v27
    %v70 = vpack.c.b16 %v66, %v62
    %v71 = vpack.c.b16 %v67, %v63
    %v72 = vpack.c.b16 %v68, %v64
    %v73 = vpack.c.b16 %v69, %v65
    %vm78 = vcmask 130048
    %v80 = vsel %vm78, %v54, 0
    %v83 = vsel %vm78, %v55, 0
    %v86 = vsel %vm78, %v56, 0
    %v89 = vsel %vm78, %v57, 0
    %91 = vmatpush.bf16.msra.mxu0 0
    %92 = vmatpush.bf16.msra.mxu0 0
    %93 = vmatpush.bf16.msra.mxu0 0
    %94 = vmatpush.bf16.msra.mxu0 0
    %95 = vmatpush.bf16.msra.mxu0 0
    %96 = vmatpush.bf16.msra.mxu0 0
    %97 = vmatpush.bf16.msra.mxu0 0
    %98 = vmatpush.bf16.msra.mxu0 %v70
    %99 = vmatmul.bf16.gmra.mxu0 %v80
    %v100 = vpop.f32.mrf.mxu0
    %v101 = vadd.f32 %v30, %v100
    %v102 = vpop.f32.mrf.mxu0
    %v103 = vadd.f32 %v30, %v102
    %104 = vmatmul.bf16.gmra.mxu0 %v83
    %v105 = vpop.f32.mrf.mxu0
    %v106 = vadd.f32 %v30, %v105
    %v107 = vpop.f32.mrf.mxu0
    %v108 = vadd.f32 %v30, %v107
    %109 = vmatmul.bf16.gmra.mxu0 %v86
    %v110 = vpop.f32.mrf.mxu0
    %v111 = vadd.f32 %v30, %v110
    %v112 = vpop.f32.mrf.mxu0
    %v113 = vadd.f32 %v30, %v112
    %114 = vmatmul.bf16.gmra.mxu0 %v89
    %v115 = vpop.f32.mrf.mxu0
    %v116 = vadd.f32 %v30, %v115
    %v117 = vpop.f32.mrf.mxu0
    %v118 = vadd.f32 %v30, %v117
    %119 = vdwg.mxu0
    %120 = vmatpush.bf16.msra.mxu0 0
    %121 = vmatpush.bf16.msra.mxu0 0
    %122 = vmatpush.bf16.msra.mxu0 0
    %123 = vmatpush.bf16.msra.mxu0 0
    %124 = vmatpush.bf16.msra.mxu0 0
    %125 = vmatpush.bf16.msra.mxu0 0
    %126 = vmatpush.bf16.msra.mxu0 0
    %127 = vmatpush.bf16.msra.mxu0 %v71
    %128 = vmatmul.bf16.gmra.mxu0 %v80
    %v129 = vpop.f32.mrf.mxu0
    %v130 = vadd.f32 %v31, %v129
    %v131 = vpop.f32.mrf.mxu0
    %v132 = vadd.f32 %v31, %v131
    %133 = vmatmul.bf16.gmra.mxu0 %v83
    %v134 = vpop.f32.mrf.mxu0
    %v135 = vadd.f32 %v31, %v134
    %v136 = vpop.f32.mrf.mxu0
    %v137 = vadd.f32 %v31, %v136
    %138 = vmatmul.bf16.gmra.mxu0 %v86
    %v139 = vpop.f32.mrf.mxu0
    %v140 = vadd.f32 %v31, %v139
    %v141 = vpop.f32.mrf.mxu0
    %v142 = vadd.f32 %v31, %v141
    %143 = vmatmul.bf16.gmra.mxu0 %v89
    %v144 = vpop.f32.mrf.mxu0
    %v145 = vadd.f32 %v31, %v144
    %v146 = vpop.f32.mrf.mxu0
    %v147 = vadd.f32 %v31, %v146
    %148 = vdwg.mxu0
    %149 = vmatpush.bf16.msra.mxu0 0
    %150 = vmatpush.bf16.msra.mxu0 0
    %151 = vmatpush.bf16.msra.mxu0 0
    %152 = vmatpush.bf16.msra.mxu0 0
    %153 = vmatpush.bf16.msra.mxu0 0
    %154 = vmatpush.bf16.msra.mxu0 0
    %155 = vmatpush.bf16.msra.mxu0 0
    %156 = vmatpush.bf16.msra.mxu0 %v72
    %157 = vmatmul.bf16.gmra.mxu0 %v80
    %v158 = vpop.f32.mrf.mxu0
    %v159 = vadd.f32 %v32, %v158
    %v160 = vpop.f32.mrf.mxu0
    %v161 = vadd.f32 %v32, %v160
    %162 = vmatmul.bf16.gmra.mxu0 %v83
    %v163 = vpop.f32.mrf.mxu0
    %v164 = vadd.f32 %v32, %v163
    %v165 = vpop.f32.mrf.mxu0
    %v166 = vadd.f32 %v32, %v165
    %167 = vmatmul.bf16.gmra.mxu0 %v86
    %v168 = vpop.f32.mrf.mxu0
    %v169 = vadd.f32 %v32, %v168
    %v170 = vpop.f32.mrf.mxu0
    %v171 = vadd.f32 %v32, %v170
    %172 = vmatmul.bf16.gmra.mxu0 %v89
    %v173 = vpop.f32.mrf.mxu0
    %v174 = vadd.f32 %v32, %v173
    %v175 = vpop.f32.mrf.mxu0
    %v176 = vadd.f32 %v32, %v175
    %177 = vdwg.mxu0
    %178 = vmatpush.bf16.msra.mxu0 0
    %179 = vmatpush.bf16.msra.mxu0 0
    %180 = vmatpush.bf16.msra.mxu0 0
    %181 = vmatpush.bf16.msra.mxu0 0
    %182 = vmatpush.bf16.msra.mxu0 0
    %183 = vmatpush.bf16.msra.mxu0 0
    %184 = vmatpush.bf16.msra.mxu0 0
    %185 = vmatpush.bf16.msra.mxu0 %v73
    %186 = vmatmul.bf16.gmra.mxu0 %v80
    %v187 = vpop.f32.mrf.mxu0
    %v188 = vadd.f32 %v33, %v187
    %v189 = vpop.f32.mrf.mxu0
    %v190 = vadd.f32 %v33, %v189
    %191 = vmatmul.bf16.gmra.mxu0 %v83
    %v192 = vpop.f32.mrf.mxu0
    %v193 = vadd.f32 %v33, %v192
    %v194 = vpop.f32.mrf.mxu0
    %v195 = vadd.f32 %v33, %v194
    %196 = vmatmul.bf16.gmra.mxu0 %v86
    %v197 = vpop.f32.mrf.mxu0
    %v198 = vadd.f32 %v33, %v197
    %v199 = vpop.f32.mrf.mxu0
    %v200 = vadd.f32 %v33, %v199
    %201 = vmatmul.bf16.gmra.mxu0 %v89
    %v202 = vpop.f32.mrf.mxu0
    %v203 = vadd.f32 %v33, %v202
    %v204 = vpop.f32.mrf.mxu0
    %v205 = vadd.f32 %v33, %v204
    %206 = vdwg.mxu0
    %v207 = vpack.c.bf16 %v130, %v101
    %v208 = vpack.c.bf16 %v188, %v159
    %v209 = vpack.c.bf16 %v132, %v103
    %v210 = vpack.c.bf16 %v190, %v161
    %v211 = vpack.c.bf16 %v135, %v106
    %v212 = vpack.c.bf16 %v193, %v164
    %v213 = vpack.c.bf16 %v137, %v108
    %v214 = vpack.c.bf16 %v195, %v166
    %v215 = vpack.c.bf16 %v140, %v111
    %v216 = vpack.c.bf16 %v198, %v169
    %v217 = vpack.c.bf16 %v142, %v113
    %v218 = vpack.c.bf16 %v200, %v171
    %v219 = vpack.c.bf16 %v145, %v116
    %v220 = vpack.c.bf16 %v203, %v174
    %v221 = vpack.c.bf16 %v147, %v118
    %v222 = vpack.c.bf16 %v205, %v176
    %223 = vst [vmem:[#allocation2] sm:$0xff] %v207
    %224 = vst [vmem:[#allocation2 + $0x8] sm:$0xff] %v208
    %225 = vst [vmem:[#allocation2 + $0x10] sm:$0xff] %v209
    %226 = vst [vmem:[#allocation2 + $0x18] sm:$0xff] %v210
    %227 = vst [vmem:[#allocation2 + $0x20] sm:$0xff] %v211
    %228 = vst [vmem:[#allocation2 + $0x28] sm:$0xff] %v212
    %229 = vst [vmem:[#allocation2 + $0x30] sm:$0xff] %v213
    %230 = vst [vmem:[#allocation2 + $0x38] sm:$0xff] %v214
    %231 = vst [vmem:[#allocation2 + $0x40] sm:$0xff] %v215
    %232 = vst [vmem:[#allocation2 + $0x48] sm:$0xff] %v216
    %233 = vst [vmem:[#allocation2 + $0x50] sm:$0xff] %v217
    %234 = vst [vmem:[#allocation2 + $0x58] sm:$0xff] %v218
    %235 = vst [vmem:[#allocation2 + $0x60] sm:$0xff] %v219
    %236 = vst [vmem:[#allocation2 + $0x68] sm:$0xff] %v220
    %237 = vst [vmem:[#allocation2 + $0x70] sm:$0xff] %v221
    %238 = vst [vmem:[#allocation2 + $0x78] sm:$0xff] %v222
    // Predicated region
    $region14: #{tpu_custom_call.1} parent=1 // pred_check
      _
    $region15: #{tpu_custom_call.1} parent=1 // pred_check_branch
      %240 = sbr.rel (0) target = $region17
    $region16: #{tpu_custom_call.1} parent=1 // pred_region
      %242 = vsyncadd [#allocation3], 0
      %s243 = sshll.u32 [#allocation2], 4
      %s244 = int_to_ptr.vmem [resolvable:$true] %s243
      %s245 = sshll.u32 %s3, 4
      %s246 = int_to_ptr.hbm [resolvable:$true] %s245
      %251 = dma.vmem_to_hbm [thread:$0]  %s244, 2048, %s246, [#allocation3], 256, 256, 16
    $region17: #{tpu_custom_call.1} parent=1 // pred_fallthru
      _
    // Predicated region
    $region18: #{tpu_custom_call.1} parent=1 // pred_check
      _
    $region19: #{tpu_custom_call.1} parent=1 // pred_check_branch
      %253 = sbr.rel (0) target = $region21
    $region20: #{tpu_custom_call.1} parent=1 // pred_region
      %255 = dma.done [#allocation3], 2048
    $region21: #{tpu_custom_call.1} parent=1 // pred_fallthru
      _
    %256 = vsyncpa [#allocation3], 1

</llo_original>
